<compile_context>
chip_gen: v5e
topology: v5e:2x2
jax: 0.10.0
libtpu: 0.0.40
codegen_flags: <defaults>
</compile_context>

<pallas_src>
import jax
import jax.numpy as jnp
from jax.experimental import pallas as pl
from jax.experimental.pallas import tpu as pltpu


def _round_up(x, m):
    return (x + m - 1) // m * m


# ---------------------------------------------------------------------------
# Fused kernel: conv3x3 (as one im2col matmul) + bias + ReLU + avg-pool +
#               (fc∘output_layer) folded matmul
# ---------------------------------------------------------------------------
def cmr_fused_kernel(p_ref, wc_ref, bc_ref, wfo_ref, bfo_ref, o_ref):
    # p_ref  : (Nb, HW, Kp)  bf16  im2col patches (K = 9*C zero-padded to Kp=128)
    # wc_ref : (Kp, Fp)      bf16  conv weight (padded rows/cols zero)
    # bc_ref : (1, Fp)       f32   conv bias
    # wfo_ref: (Fp, Op)      bf16  folded (fc @ output) weight, pre-scaled by 1/(H*W)
    # bfo_ref: (1, Op)       f32   folded bias  (fc_b @ out_w + out_b)
    # o_ref  : (Nb, 1, Op)   f32
    Nb, HW, Kp = p_ref.shape
    Fp = wc_ref.shape[1]
    Op = wfo_ref.shape[1]

    # conv3x3 over all Nb images as ONE dense MXU matmul (K = Kp = 128)
    lhs = p_ref[...].reshape(Nb * HW, Kp)
    conv = jnp.dot(lhs, wc_ref[...], preferred_element_type=jnp.float32)   # (Nb*HW, Fp)
    feats = jnp.maximum(conv + bc_ref[...], 0.0)                           # f32 bias+ReLU

    # AdaptiveAvgPool2d((1,1)): per-image spatial sum; 1/(H*W) folded into wfo
    pooled = jnp.sum(feats.reshape(Nb, HW, Fp), axis=1)                    # (Nb, Fp) f32

    # fc + output_layer folded into a single matmul
    out = jnp.dot(pooled.astype(wfo_ref.dtype), wfo_ref[...],
                  preferred_element_type=jnp.float32) + bfo_ref[...]       # (Nb, Op)
    o_ref[...] = out.reshape(Nb, 1, Op)


# ---------------------------------------------------------------------------
# Wrapper
# ---------------------------------------------------------------------------
def cmr_forward(x_nchw, params, *, nb=None):
    """Forward pass of the concrete CMRModel. x_nchw: (N, C, H, W) float32."""
    N, C, H, W = x_nchw.shape
    F = params["conv_w"].shape[-1]
    O = params["out_w"].shape[1]
    HW = H * W
    K = 9 * C
    Kp = _round_up(K, 128)
    Fp = _round_up(F, 128)
    Op = _round_up(O, 128)

    # ---- im2col in the wrapper (lane-dense Kp last dim; tiny at these shapes) ----
    x_nhwc = jnp.transpose(x_nchw, (0, 2, 3, 1))
    xp = jnp.pad(x_nhwc, ((0, 0), (1, 1), (1, 1), (0, 0)))
    cols = [xp[:, dh:dh + H, dw:dw + W, :] for dh in range(3) for dw in range(3)]
    patches = jnp.concatenate(cols, axis=-1).reshape(N, HW, K)

    # Batch tiling: >=2 "parallel" grid steps so both v7x TCs get work; on
    # v5e/v6e (serial grid) this is still only 2 steps of ~0.35us overhead.
    if nb is None:
        nb = max(1, -(-N // 2))              # ceil(N/2)
    n_pad = _round_up(N, nb)
    patches = jnp.pad(patches, ((0, n_pad - N), (0, 0), (0, Kp - K))).astype(jnp.bfloat16)

    # ---- weights: zero-padded, lane-dense; matmul operands bf16, biases f32 ----
    wc = jnp.zeros((Kp, Fp), jnp.float32).at[:K, :F].set(
        params["conv_w"].reshape(K, F)).astype(jnp.bfloat16)
    bc = jnp.zeros((1, Fp), jnp.float32).at[:, :F].set(params["conv_b"].reshape(1, F))
    # fc and output_layer folded (return_latent_space=False, no nonlinearity between),
    # with the 1/(H*W) average-pool scale folded into the weight.
    wfo_f32 = (params["fc_w"] @ params["out_w"]) / float(HW)
    bfo_f32 = params["fc_b"] @ params["out_w"] + params["out_b"]
    wfo = jnp.zeros((Fp, Op), jnp.float32).at[:F, :O].set(wfo_f32).astype(jnp.bfloat16)
    bfo = jnp.zeros((1, Op), jnp.float32).at[:, :O].set(bfo_f32.reshape(1, O))

    grid = (n_pad // nb,)
    flops = n_pad * (2 * HW * Kp * Fp + 2 * HW * Fp + 2 * Fp * Op)
    bytes_accessed = (2 * (patches.size + wc.size + wfo.size)
                      + 4 * (bc.size + bfo.size + n_pad * Op))

    out_padded = pl.pallas_call(
        cmr_fused_kernel,
        out_shape=jax.ShapeDtypeStruct((n_pad, 1, Op), jnp.float32),
        grid=grid,
        in_specs=[
            pl.BlockSpec((nb, HW, Kp), lambda n: (n, 0, 0)),
            pl.BlockSpec((Kp, Fp), lambda n: (0, 0)),     # resident (constant block)
            pl.BlockSpec((1, Fp), lambda n: (0, 0)),
            pl.BlockSpec((Fp, Op), lambda n: (0, 0)),
            pl.BlockSpec((1, Op), lambda n: (0, 0)),
        ],
        out_specs=pl.BlockSpec((nb, 1, Op), lambda n: (n, 0, 0)),
        compiler_params=pltpu.CompilerParams(dimension_semantics=("parallel",)),
        cost_estimate=pl.CostEstimate(flops=flops, transcendentals=0,
                                      bytes_accessed=bytes_accessed),
    )(patches, wc, bc, wfo, bfo)

    return out_padded[:N, 0, :O]                          # (N, num_outputs)


# ---------------------------------------------------------------------------
# Params + pure-JAX reference
# ---------------------------------------------------------------------------
def init_params(key, in_ch, feature_dim, latent_dim, num_outputs):
    k = jax.random.split(key, 6)
    s = 0.05
    return {
        "conv_w": s * jax.random.normal(k[0], (3, 3, in_ch, feature_dim), jnp.float32),
        "conv_b": s * jax.random.normal(k[1], (feature_dim,), jnp.float32),
        "fc_w":   s * jax.random.normal(k[2], (feature_dim, latent_dim), jnp.float32),
        "fc_b":   s * jax.random.normal(k[3], (latent_dim,), jnp.float32),
        "out_w":  s * jax.random.normal(k[4], (latent_dim, num_outputs), jnp.float32),
        "out_b":  s * jax.random.normal(k[5], (num_outputs,), jnp.float32),
    }


def reference_forward(x_nchw, params):
    """Pure-JAX f32 reference mirroring the PyTorch semantics (no folding)."""
    x = jnp.transpose(x_nchw, (0, 2, 3, 1))
    N, H, W, C = x.shape
    xp = jnp.pad(x, ((0, 0), (1, 1), (1, 1), (0, 0)))
    cols = [xp[:, dh:dh + H, dw:dw + W, :] for dh in range(3) for dw in range(3)]
    patches = jnp.concatenate(cols, axis=-1).reshape(N * H * W, 9 * C)
    w = params["conv_w"].reshape(9 * C, -1)
    feats = jnp.maximum(patches @ w + params["conv_b"], 0.0)   # backbone stand-in + ReLU
    pooled = feats.reshape(N, H * W, -1).mean(axis=1)          # AdaptiveAvgPool2d((1,1))
    lat = pooled @ params["fc_w"] + params["fc_b"]             # self.fc
    return lat @ params["out_w"] + params["out_b"]             # self.output_layer


if __name__ == "__main__":
    # Small shapes consistent with the module: input_size (channels) = 2,
    # default latent_dim = 200, num_outputs = 1; stand-in backbone feature_dim = 32.
    N, C, H, W = 2, 2, 16, 16
    feature_dim = 32
    latent_dim = 200
    num_outputs = 1

    key = jax.random.PRNGKey(0)
    kx, kp = jax.random.split(key)
    x = jax.random.normal(kx, (N, C, H, W), jnp.float32)       # PyTorch-style NCHW input
    params = init_params(kp, C, feature_dim, latent_dim, num_outputs)

    out = jax.jit(cmr_forward)(x, params)
    out = jax.block_until_ready(out)

    ref = reference_forward(x, params)
    assert out.shape == (N, num_outputs)
    assert jnp.allclose(out, ref, atol=1e-3, rtol=1e-3), float(jnp.max(jnp.abs(out - ref)))

    print("KERNEL_OK")
</pallas_src>

<mosaic_0001>
module attributes {stable_mosaic.version = 11 : i64} {
  func.func @cmr_fused_kernel(%arg0: i32, %arg1: memref<1x256x128xbf16, #tpu.memory_space<vmem>>, %arg2: memref<128x128xbf16, #tpu.memory_space<vmem>>, %arg3: memref<1x128xf32, #tpu.memory_space<vmem>>, %arg4: memref<128x128xbf16, #tpu.memory_space<vmem>>, %arg5: memref<1x128xf32, #tpu.memory_space<vmem>>, %arg6: memref<1x1x128xf32, #tpu.memory_space<vmem>>) attributes {dimension_semantics = [#tpu.dimension_semantics<parallel>], iteration_bounds = array<i64: 2>, scalar_prefetch = 0 : i64, scratch_operands = 0 : i64, tpu.core_type = #tpu.core_type<tc>, window_params = [{transform_indices = @transform_0, window_bounds = array<i64: 1, 256, 128>}, {pipeline_mode = #tpu.pipeline_mode<synchronous>, transform_indices = @transform_1, window_bounds = array<i64: 128, 128>}, {pipeline_mode = #tpu.pipeline_mode<synchronous>, transform_indices = @transform_2, window_bounds = array<i64: 1, 128>}, {pipeline_mode = #tpu.pipeline_mode<synchronous>, transform_indices = @transform_3, window_bounds = array<i64: 128, 128>}, {pipeline_mode = #tpu.pipeline_mode<synchronous>, transform_indices = @transform_4, window_bounds = array<i64: 1, 128>}, {transform_indices = @transform_5, window_bounds = array<i64: 1, 1, 128>}]} {
    %c0 = arith.constant 0 : index
    %c0_0 = arith.constant 0 : index
    %c0_1 = arith.constant 0 : index
    %0 = vector.load %arg1[%c0, %c0_0, %c0_1] : memref<1x256x128xbf16, #tpu.memory_space<vmem>>, vector<1x256x128xbf16>
    %1 = vector.shape_cast %0 : vector<1x256x128xbf16> to vector<256x128xbf16>
    %c0_2 = arith.constant 0 : index
    %c0_3 = arith.constant 0 : index
    %2 = vector.load %arg2[%c0_2, %c0_3] : memref<128x128xbf16, #tpu.memory_space<vmem>>, vector<128x128xbf16>
    %cst = arith.constant dense<0.000000e+00> : vector<256x128xf32>
    %3 = tpu.matmul %1, %2, %cst {dimension_numbers = #tpu.dot_dimension_numbers<[1], [0], [0], [1], [0, 0, 1, 1], [], []>} : vector<256x128xbf16>, vector<128x128xbf16>, vector<256x128xf32> -> vector<256x128xf32>
    %c0_4 = arith.constant 0 : index
    %c0_5 = arith.constant 0 : index
    %4 = vector.load %arg3[%c0_4, %c0_5] : memref<1x128xf32, #tpu.memory_space<vmem>>, vector<1x128xf32>
    %5 = vector.broadcast %4 : vector<1x128xf32> to vector<256x128xf32>
    %6 = arith.addf %3, %5 : vector<256x128xf32>
    %cst_6 = arith.constant 0.000000e+00 : f32
    %7 = vector.broadcast %cst_6 : f32 to vector<256x128xf32>
    %8 = arith.maximumf %6, %7 : vector<256x128xf32>
    %9 = vector.shape_cast %8 : vector<256x128xf32> to vector<1x256x128xf32>
    %cst_7 = arith.constant dense<0.000000e+00> : vector<1x128xf32>
    %10 = vector.multi_reduction <add>, %9, %cst_7 [1] : vector<1x256x128xf32> to vector<1x128xf32>
    %11 = arith.truncf %10 : vector<1x128xf32> to vector<1x128xbf16>
    %c0_8 = arith.constant 0 : index
    %c0_9 = arith.constant 0 : index
    %12 = vector.load %arg4[%c0_8, %c0_9] : memref<128x128xbf16, #tpu.memory_space<vmem>>, vector<128x128xbf16>
    %cst_10 = arith.constant dense<0.000000e+00> : vector<1x128xf32>
    %13 = tpu.matmul %11, %12, %cst_10 {dimension_numbers = #tpu.dot_dimension_numbers<[1], [0], [0], [1], [0, 0, 1, 1], [], []>} : vector<1x128xbf16>, vector<128x128xbf16>, vector<1x128xf32> -> vector<1x128xf32>
    %c0_11 = arith.constant 0 : index
    %c0_12 = arith.constant 0 : index
    %14 = vector.load %arg5[%c0_11, %c0_12] : memref<1x128xf32, #tpu.memory_space<vmem>>, vector<1x128xf32>
    %15 = arith.addf %13, %14 : vector<1x128xf32>
    %16 = vector.shape_cast %15 : vector<1x128xf32> to vector<1x1x128xf32>
    %c0_13 = arith.constant 0 : index
    %c0_14 = arith.constant 0 : index
    %c0_15 = arith.constant 0 : index
    %17 = vector.load %arg6[%c0_13, %c0_14, %c0_15] : memref<1x1x128xf32, #tpu.memory_space<vmem>>, vector<1x1x128xf32>
    tpu.vector_store %arg6[%c0_13, %c0_14, %c0_15], %16 {strides = array<i32>} : memref<1x1x128xf32, #tpu.memory_space<vmem>>, vector<1x1x128xf32>,
    return
  }
  func.func @transform_0(%arg0: i32) -> (i32, i32, i32) {
    %c0_i32 = arith.constant 0 : i32
    %c0_i32_0 = arith.constant 0 : i32
    %c0_i32_1 = arith.constant 0 : i32
    return %arg0, %c0_i32, %c0_i32_0 : i32, i32, i32
  }
  func.func @transform_1(%arg0: i32) -> (i32, i32) {
    %c0_i32 = arith.constant 0 : i32
    %c0_i32_0 = arith.constant 0 : i32
    %c0_i32_1 = arith.constant 0 : i32
    return %c0_i32, %c0_i32_0 : i32, i32
  }
  func.func @transform_2(%arg0: i32) -> (i32, i32) {
    %c0_i32 = arith.constant 0 : i32
    %c0_i32_0 = arith.constant 0 : i32
    %c0_i32_1 = arith.constant 0 : i32
    return %c0_i32, %c0_i32_0 : i32, i32
  }
  func.func @transform_3(%arg0: i32) -> (i32, i32) {
    %c0_i32 = arith.constant 0 : i32
    %c0_i32_0 = arith.constant 0 : i32
    %c0_i32_1 = arith.constant 0 : i32
    return %c0_i32, %c0_i32_0 : i32, i32
  }
  func.func @transform_4(%arg0: i32) -> (i32, i32) {
    %c0_i32 = arith.constant 0 : i32
    %c0_i32_0 = arith.constant 0 : i32
    %c0_i32_1 = arith.constant 0 : i32
    return %c0_i32, %c0_i32_0 : i32, i32
  }
  func.func @transform_5(%arg0: i32) -> (i32, i32, i32) {
    %c0_i32 = arith.constant 0 : i32
    %c0_i32_0 = arith.constant 0 : i32
    %c0_i32_1 = arith.constant 0 : i32
    return %arg0, %c0_i32, %c0_i32_0 : i32, i32, i32
  }
}

</mosaic_0001>

<llo_original>
// kernel: cmr_forward.1
$region0: #{cmr_forward.1}
  #allocation0 [shape = 'u32[]', space=smem, size = 0x4, offset = 0x4, fixed_abs, tag = 'smem constant byte address 0x4 - core index']
  #allocation1 [shape = 'u32[72,128]{1,0:T(1,128)}', space=vmem, size = 0x9000, scoped, tag = 'internal scratch']
  %s0 = inlined_call_operand.vmem [shape: bf16[2,256,128], index: 0, kind: input, shape index: {}]
  %s1 = inlined_call_operand.vmem [shape: bf16[128,128], index: 1, kind: input, shape index: {}]
  %s2 = inlined_call_operand.vmem [shape: f32[1,128], index: 2, kind: input, shape index: {}]
  %s3 = inlined_call_operand.vmem [shape: bf16[128,128], index: 3, kind: input, shape index: {}]
  %s4 = inlined_call_operand.vmem [shape: f32[1,128], index: 4, kind: input, shape index: {}]
  %s5 = inlined_call_operand.vmem [shape: f32[2,1,128], index: 5, kind: output, shape index: {}]
  %s6 = sld [smem:[#allocation0]]
  $region53: #{cmr_forward.1} parent=0
    _
  %s8 = ssub.s32 1, %s6
  %s9 = scalar_select 0, %s8, %s6
  loop: start=0, step=1, limit=4
  $region2: #{cmr_forward.1} parent=0 // loop_pre_header
    _
  $region3: #{cmr_forward.1} parent=0 // loop_header
    %s11 = sphi 0, %s15
    %p12 = scmp.ge.s32.totalorder %s11, 4
    %s21 = sphi 0, %s23
    %s24 = sphi 0, %s21
    %s25 = sphi 0, %s24
    %s41 = sphi 0, %s25
    %s45 = sphi 0, %s45
    %s47 = sphi 0, %s45
    %s48 = sphi 0, %s47
    %s62 = sphi 0, %s48
    %s66 = sphi 0, %s66
    %s68 = sphi 0, %s66
    %s69 = sphi 0, %s68
    %s83 = sphi 0, %s69
    %s87 = sphi 0, %s87
    %s89 = sphi 0, %s87
    %s90 = sphi 0, %s89
    %s104 = sphi 0, %s90
    %s108 = sphi 0, %s108
    %s110 = sphi 0, %s108
    %s111 = sphi 0, %s110
    %s125 = sphi 0, %s111
    %s131 = sphi 0, %s133
    %s134 = sphi 0, %s131
    %s135 = sphi 0, %s134
    %s151 = sphi 0, %s135
  $region4: #{cmr_forward.1} parent=0 // loop_header_branch
    %14 = sbr.rel (%p12) target = $region8
  $region5: #{cmr_forward.1} parent=0 // loop_body
    %s16 = ssub.s32 %s11, 1
    %s17 = ssub.s32 %s11, 2
    %s18 = sadd.s32 %s11, 1
    %s19 = ssub.s32 %s11, %s18
    %p20 = scmp.eq.s32.totalorder %s19, 0
    %s22 = sadd.s32 %s21, 1
    %s23 = scalar_select %p20, %s21, %s22
    %p26 = pneg %p20
    %p27 = scmp.eq.s32.totalorder %s11, 1
    %p28 = por %p26, %p27
    %p29 = scmp.ne.s32.totalorder %s21, %s24
    %p30 = scmp.eq.s32.totalorder %s11, 0
    %p31 = por %p29, %p30
    %p32 = scmp.ne.s32.totalorder %s21, %s24
    %p33 = scmp.eq.s32.totalorder %s16, 1
    %p34 = por %p32, %p33
    %p35 = scmp.ne.s32.totalorder %s24, %s25
    %p36 = scmp.eq.s32.totalorder %s16, 0
    %p37 = por %p35, %p36
    %p38 = scmp.ne.s32.totalorder %s24, %s25
    %p39 = scmp.eq.s32.totalorder %s17, 1
    %p40 = por %p38, %p39
    %p42 = scmp.ne.s32.totalorder %s25, %s41
    %p43 = scmp.eq.s32.totalorder %s17, 0
    %p44 = por %p42, %p43
    %s46 = sadd.s32 %s45, 1
    %p49 = scmp.eq.s32.totalorder %s11, 1
    %p50 = scmp.ne.s32.totalorder %s45, %s47
    %p51 = scmp.eq.s32.totalorder %s11, 0
    %p52 = por %p50, %p51
    %p53 = scmp.ne.s32.totalorder %s45, %s47
    %p54 = scmp.eq.s32.totalorder %s16, 1
    %p55 = por %p53, %p54
    %p56 = scmp.ne.s32.totalorder %s47, %s48
    %p57 = scmp.eq.s32.totalorder %s16, 0
    %p58 = por %p56, %p57
    %p59 = scmp.ne.s32.totalorder %s47, %s48
    %p60 = scmp.eq.s32.totalorder %s17, 1
    %p61 = por %p59, %p60
    %p63 = scmp.ne.s32.totalorder %s48, %s62
    %p64 = scmp.eq.s32.totalorder %s17, 0
    %p65 = por %p63, %p64
    %s67 = sadd.s32 %s66, 1
    %p70 = scmp.eq.s32.totalorder %s11, 1
    %p71 = scmp.ne.s32.totalorder %s66, %s68
    %p72 = scmp.eq.s32.totalorder %s11, 0
    %p73 = por %p71, %p72
    %p74 = scmp.ne.s32.totalorder %s66, %s68
    %p75 = scmp.eq.s32.totalorder %s16, 1
    %p76 = por %p74, %p75
    %p77 = scmp.ne.s32.totalorder %s68, %s69
    %p78 = scmp.eq.s32.totalorder %s16, 0
    %p79 = por %p77, %p78
    %p80 = scmp.ne.s32.totalorder %s68, %s69
    %p81 = scmp.eq.s32.totalorder %s17, 1
    %p82 = por %p80, %p81
    %p84 = scmp.ne.s32.totalorder %s69, %s83
    %p85 = scmp.eq.s32.totalorder %s17, 0
    %p86 = por %p84, %p85
    %s88 = sadd.s32 %s87, 1
    %p91 = scmp.eq.s32.totalorder %s11, 1
    %p92 = scmp.ne.s32.totalorder %s87, %s89
    %p93 = scmp.eq.s32.totalorder %s11, 0
    %p94 = por %p92, %p93
    %p95 = scmp.ne.s32.totalorder %s87, %s89
    %p96 = scmp.eq.s32.totalorder %s16, 1
    %p97 = por %p95, %p96
    %p98 = scmp.ne.s32.totalorder %s89, %s90
    %p99 = scmp.eq.s32.totalorder %s16, 0
    %p100 = por %p98, %p99
    %p101 = scmp.ne.s32.totalorder %s89, %s90
    %p102 = scmp.eq.s32.totalorder %s17, 1
    %p103 = por %p101, %p102
    %p105 = scmp.ne.s32.totalorder %s90, %s104
    %p106 = scmp.eq.s32.totalorder %s17, 0
    %p107 = por %p105, %p106
    %s109 = sadd.s32 %s108, 1
    %p112 = scmp.eq.s32.totalorder %s11, 1
    %p113 = scmp.ne.s32.totalorder %s108, %s110
    %p114 = scmp.eq.s32.totalorder %s11, 0
    %p115 = por %p113, %p114
    %p116 = scmp.ne.s32.totalorder %s108, %s110
    %p117 = scmp.eq.s32.totalorder %s16, 1
    %p118 = por %p116, %p117
    %p119 = scmp.ne.s32.totalorder %s110, %s111
    %p120 = scmp.eq.s32.totalorder %s16, 0
    %p121 = por %p119, %p120
    %p122 = scmp.ne.s32.totalorder %s110, %s111
    %p123 = scmp.eq.s32.totalorder %s17, 1
    %p124 = por %p122, %p123
    %p126 = scmp.ne.s32.totalorder %s111, %s125
    %p127 = scmp.eq.s32.totalorder %s17, 0
    %p128 = por %p126, %p127
    %s129 = ssub.s32 %s11, %s18
    %p130 = scmp.eq.s32.totalorder %s129, 0
    %s132 = sadd.s32 %s131, 1
    %s133 = scalar_select %p130, %s131, %s132
    %p136 = pneg %p130
    %p137 = scmp.eq.s32.totalorder %s11, 1
    %p138 = por %p136, %p137
    %p139 = scmp.ne.s32.totalorder %s131, %s134
    %p140 = scmp.eq.s32.totalorder %s11, 0
    %p141 = por %p139, %p140
    %p142 = scmp.ne.s32.totalorder %s131, %s134
    %p143 = scmp.eq.s32.totalorder %s16, 1
    %p144 = por %p142, %p143
    %p145 = scmp.ne.s32.totalorder %s134, %s135
    %p146 = scmp.eq.s32.totalorder %s16, 0
    %p147 = por %p145, %p146
    %p148 = scmp.ne.s32.totalorder %s134, %s135
    %p149 = scmp.eq.s32.totalorder %s17, 1
    %p150 = por %p148, %p149
    %p152 = scmp.ne.s32.totalorder %s135, %s151
    %p153 = scmp.eq.s32.totalorder %s17, 0
    %p154 = por %p152, %p153
    %p155 = scmp.le.s32.totalorder 1, %s11
    %p156 = scmp.lt.s32.totalorder %s11, 3
    %p157 = pnand %p155, %p156
    %p158 = pneg %p157
    // Predicated region
    $region9: #{cmr_forward.1} parent=5 // pred_check
      _
    $region10: #{cmr_forward.1} parent=5 // pred_check_branch
      %160 = sbr.rel (%p157) target = $region12
    $region11: #{cmr_forward.1} parent=5 // pred_region
      %s161 = ssub.s32 %s11, 1
      // Predicated region
      $region13: #{cmr_forward.1} parent=11 // pred_check
        %p162 = pneg %p58
      $region14: #{cmr_forward.1} parent=11 // pred_check_branch
        %164 = sbr.rel (%p162) target = $region16
      $region15: #{cmr_forward.1} parent=11 // pred_region
        _
      $region16: #{cmr_forward.1} parent=11 // pred_fallthru
        _
      // Predicated region
      $region17: #{cmr_forward.1} parent=11 // pred_check
        %p165 = pneg %p79
      $region18: #{cmr_forward.1} parent=11 // pred_check_branch
        %167 = sbr.rel (%p165) target = $region20
      $region19: #{cmr_forward.1} parent=11 // pred_region
        _
      $region20: #{cmr_forward.1} parent=11 // pred_fallthru
        _
      // Predicated region
      $region21: #{cmr_forward.1} parent=11 // pred_check
        %p168 = pneg %p100
      $region22: #{cmr_forward.1} parent=11 // pred_check_branch
        %170 = sbr.rel (%p168) target = $region24
      $region23: #{cmr_forward.1} parent=11 // pred_region
        _
      $region24: #{cmr_forward.1} parent=11 // pred_fallthru
        _
      // Predicated region
      $region25: #{cmr_forward.1} parent=11 // pred_check
        %p171 = pneg %p121
      $region26: #{cmr_forward.1} parent=11 // pred_check_branch
        %173 = sbr.rel (%p171) target = $region28
      $region27: #{cmr_forward.1} parent=11 // pred_region
        _
      $region28: #{cmr_forward.1} parent=11 // pred_fallthru
        _
    $region12: #{cmr_forward.1} parent=5 // pred_fallthru
      _
    %p174 = scmp.lt.s32.totalorder %s11, 2
    // Predicated region
    $region29: #{cmr_forward.1} parent=5 // pred_check
      %p175 = pneg %p174
    $region30: #{cmr_forward.1} parent=5 // pred_check_branch
      %177 = sbr.rel (%p175) target = $region32
    $region31: #{cmr_forward.1} parent=5 // pred_region
      // Predicated region
      $region33: #{cmr_forward.1} parent=31 // pred_check
        %p178 = pneg %p31
      $region34: #{cmr_forward.1} parent=31 // pred_check_branch
        %180 = sbr.rel (%p178) target = $region36
      $region35: #{cmr_forward.1} parent=31 // pred_region
        %p181 = scmp.lt.s32.totalorder %s11, 1
        %s182 = scalar_select %p181, %s11, 1
        %s183 = smul.addr %s182, 32
        %s184 = smul.addr %s183, 4
        %s185 = scalar_lea.vmem %s0, %s184
      $region36: #{cmr_forward.1} parent=31 // pred_fallthru
        _
    $region32: #{cmr_forward.1} parent=5 // pred_fallthru
      _
    %p186 = scmp.le.s32.totalorder 1, %s11
    %p187 = scmp.lt.s32.totalorder %s11, 3
    %p188 = pnand %p186, %p187
    %p189 = pneg %p188
    // Predicated region
    $region37: #{cmr_forward.1} parent=5 // pred_check
      _
    $region38: #{cmr_forward.1} parent=5 // pred_check_branch
      %191 = sbr.rel (%p188) target = $region40
    $region39: #{cmr_forward.1} parent=5 // pred_region
      %s192 = ssub.s32 %s11, 1
      %p193 = scmp.lt.s32.totalorder %s16, 1
      %s194 = scalar_select %p193, %s16, 1
      %s195 = smul.addr %s194, 32
      %s196 = smul.addr %s195, 4
      %s197 = scalar_lea.vmem %s0, %s196
      %p198 = pneg %p37
      %p199 = pneg %p34
      %p200 = pneg %p58
      %p201 = pneg %p55
      %p202 = pneg %p79
      %p203 = pneg %p76
      %p204 = pneg %p100
      %p205 = pneg %p97
      %p206 = pneg %p121
      %p207 = pneg %p118
      %p208 = pneg %p147
      %p209 = pneg %p144
      %p210 = scmp.lt.s32.totalorder %s16, 1
      %s211 = scalar_select %p210, %s16, 1
      %s212 = scalar_lea.vmem %s5, %s211
      %p213 = scmp.lt.s32.totalorder %s16, 1
      %s214 = scalar_select %p213, %s16, 1
      %s215 = smul.addr %s214, 32
      %s216 = smul.addr %s215, 4
      %s217 = scalar_lea.vmem %s0, %s216
      %p218 = scmp.lt.s32.totalorder %s16, 1
      %s219 = scalar_select %p218, %s16, 1
      %s220 = scalar_lea.vmem %s5, %s219
      %v221 = vld [vmem:[%s217] sm:$0xf]
      %v222 = vld [vmem:[%s217 + $0x4] sm:$0xf]
      %v223 = vld [vmem:[%s217 + $0x8] sm:$0xf]
      %v224 = vld [vmem:[%s217 + $0xc] sm:$0xf]
      %v225 = vld [vmem:[%s217 + $0x10] sm:$0xf]
      %v226 = vld [vmem:[%s217 + $0x14] sm:$0xf]
      %v227 = vld [vmem:[%s217 + $0x18] sm:$0xf]
      %v228 = vld [vmem:[%s217 + $0x1c] sm:$0xf]
      %v229 = vld [vmem:[%s217 + $0x20] sm:$0xf]
      %v230 = vld [vmem:[%s217 + $0x24] sm:$0xf]
      %v231 = vld [vmem:[%s217 + $0x28] sm:$0xf]
      %v232 = vld [vmem:[%s217 + $0x2c] sm:$0xf]
      %v233 = vld [vmem:[%s217 + $0x30] sm:$0xf]
      %v234 = vld [vmem:[%s217 + $0x34] sm:$0xf]
      %v235 = vld [vmem:[%s217 + $0x38] sm:$0xf]
      %v236 = vld [vmem:[%s217 + $0x3c] sm:$0xf]
      %v237 = vld [vmem:[%s217 + $0x40] sm:$0xf]
      %v238 = vld [vmem:[%s217 + $0x44] sm:$0xf]
      %v239 = vld [vmem:[%s217 + $0x48] sm:$0xf]
      %v240 = vld [vmem:[%s217 + $0x4c] sm:$0xf]
      %v241 = vld [vmem:[%s217 + $0x50] sm:$0xf]
      %v242 = vld [vmem:[%s217 + $0x54] sm:$0xf]
      %v243 = vld [vmem:[%s217 + $0x58] sm:$0xf]
      %v244 = vld [vmem:[%s217 + $0x5c] sm:$0xf]
      %v245 = vld [vmem:[%s217 + $0x60] sm:$0xf]
      %v246 = vld [vmem:[%s217 + $0x64] sm:$0xf]
      %v247 = vld [vmem:[%s217 + $0x68] sm:$0xf]
      %v248 = vld [vmem:[%s217 + $0x6c] sm:$0xf]
      %v249 = vld [vmem:[%s217 + $0x70] sm:$0xf]
      %v250 = vld [vmem:[%s217 + $0x74] sm:$0xf]
      %v251 = vld [vmem:[%s217 + $0x78] sm:$0xf]
      %v252 = vld [vmem:[%s217 + $0x7c] sm:$0xf]
      %v253 = vld [vmem:[%s1] sm:$0xf]
      %v254 = vld [vmem:[%s1 + $0x4] sm:$0xf]
      %v255 = vld [vmem:[%s1 + $0x8] sm:$0xf]
      %v256 = vld [vmem:[%s1 + $0xc] sm:$0xf]
      %v257 = vld [vmem:[%s1 + $0x10] sm:$0xf]
      %v258 = vld [vmem:[%s1 + $0x14] sm:$0xf]
      %v259 = vld [vmem:[%s1 + $0x18] sm:$0xf]
      %v260 = vld [vmem:[%s1 + $0x1c] sm:$0xf]
      %v261 = vld [vmem:[%s1 + $0x20] sm:$0xf]
      %v262 = vld [vmem:[%s1 + $0x24] sm:$0xf]
      %v263 = vld [vmem:[%s1 + $0x28] sm:$0xf]
      %v264 = vld [vmem:[%s1 + $0x2c] sm:$0xf]
      %v265 = vld [vmem:[%s1 + $0x30] sm:$0xf]
      %v266 = vld [vmem:[%s1 + $0x34] sm:$0xf]
      %v267 = vld [vmem:[%s1 + $0x38] sm:$0xf]
      %v268 = vld [vmem:[%s1 + $0x3c] sm:$0xf]
      %v269 = vld [vmem:[%s2] sm:$0x1]
      %v271 = vperm.slane %v269, 0
      %v305 = vunpack.c.l.b16 %v221
      %v306 = vunpack.c.l.b16 %v222
      %v307 = vunpack.c.l.b16 %v223
      %v308 = vunpack.c.l.b16 %v224
      %v309 = vunpack.c.l.b16 %v225
      %v310 = vunpack.c.l.b16 %v226
      %v311 = vunpack.c.l.b16 %v227
      %v312 = vunpack.c.l.b16 %v228
      %v313 = vunpack.c.l.b16 %v229
      %v314 = vunpack.c.l.b16 %v230
      %v315 = vunpack.c.l.b16 %v231
      %v316 = vunpack.c.l.b16 %v232
      %v317 = vunpack.c.l.b16 %v233
      %v318 = vunpack.c.l.b16 %v234
      %v319 = vunpack.c.l.b16 %v235
      %v320 = vunpack.c.l.b16 %v236
      %v321 = vunpack.c.l.b16 %v237
      %v322 = vunpack.c.l.b16 %v238
      %v323 = vunpack.c.l.b16 %v239
      %v324 = vunpack.c.l.b16 %v240
      %v325 = vunpack.c.l.b16 %v241
      %v326 = vunpack.c.l.b16 %v242
      %v327 = vunpack.c.l.b16 %v243
      %v328 = vunpack.c.l.b16 %v244
      %v329 = vunpack.c.l.b16 %v245
      %v330 = vunpack.c.l.b16 %v246
      %v331 = vunpack.c.l.b16 %v247
      %v332 = vunpack.c.l.b16 %v248
      %v333 = vunpack.c.l.b16 %v249
      %v334 = vunpack.c.l.b16 %v250
      %v335 = vunpack.c.l.b16 %v251
      %v336 = vunpack.c.l.b16 %v252
      %v337 = vpack.c.b16 %v306, %v305
      %v338 = vpack.c.b16 %v308, %v307
      %v339 = vpack.c.b16 %v310, %v309
      %v340 = vpack.c.b16 %v312, %v311
      %v341 = vpack.c.b16 %v314, %v313
      %v342 = vpack.c.b16 %v316, %v315
      %v343 = vpack.c.b16 %v318, %v317
      %v344 = vpack.c.b16 %v320, %v319
      %v345 = vpack.c.b16 %v322, %v321
      %v346 = vpack.c.b16 %v324, %v323
      %v347 = vpack.c.b16 %v326, %v325
      %v348 = vpack.c.b16 %v328, %v327
      %v349 = vpack.c.b16 %v330, %v329
      %v350 = vpack.c.b16 %v332, %v331
      %v351 = vpack.c.b16 %v334, %v333
      %v352 = vpack.c.b16 %v336, %v335
      %v385 = vunpack.c.l.b16 %v253
      %v386 = vunpack.c.l.b16 %v254
      %v387 = vunpack.c.l.b16 %v255
      %v388 = vunpack.c.l.b16 %v256
      %v389 = vunpack.c.l.b16 %v257
      %v390 = vunpack.c.l.b16 %v258
      %v391 = vunpack.c.l.b16 %v259
      %v392 = vunpack.c.l.b16 %v260
      %v393 = vunpack.c.l.b16 %v261
      %v394 = vunpack.c.l.b16 %v262
      %v395 = vunpack.c.l.b16 %v263
      %v396 = vunpack.c.l.b16 %v264
      %v397 = vunpack.c.l.b16 %v265
      %v398 = vunpack.c.l.b16 %v266
      %v399 = vunpack.c.l.b16 %v267
      %v400 = vunpack.c.l.b16 %v268
      %v401 = vpack.c.b16 %v386, %v385
      %v402 = vpack.c.b16 %v388, %v387
      %v403 = vpack.c.b16 %v390, %v389
      %v404 = vpack.c.b16 %v392, %v391
      %v405 = vpack.c.b16 %v394, %v393
      %v406 = vpack.c.b16 %v396, %v395
      %v407 = vpack.c.b16 %v398, %v397
      %v408 = vpack.c.b16 %v400, %v399
      %417 = vmatpush.bf16.msra.mxu0 %v408
      %418 = vmatpush.bf16.msra.mxu0 %v407
      %419 = vmatpush.bf16.msra.mxu0 %v406
      %420 = vmatpush.bf16.msra.mxu0 %v405
      %421 = vmatpush.bf16.msra.mxu0 %v404
      %422 = vmatpush.bf16.msra.mxu0 %v403
      %423 = vmatpush.bf16.msra.mxu0 %v402
      %424 = vmatpush.bf16.msra.mxu0 %v401
      %425 = vmatmul.bf16.gmra.mxu0 %v337
      %v426 = vpop.f32.mrf.mxu0
      %v427 = vadd.f32 %v271, %v426
      %v428 = vpop.f32.mrf.mxu0
      %v429 = vadd.f32 %v271, %v428
      %430 = vmatmul.bf16.gmra.mxu0 %v338
      %v431 = vpop.f32.mrf.mxu0
      %v432 = vadd.f32 %v271, %v431
      %v433 = vpop.f32.mrf.mxu0
      %v434 = vadd.f32 %v271, %v433
      %435 = vmatmul.bf16.gmra.mxu0 %v339
      %v436 = vpop.f32.mrf.mxu0
      %v437 = vadd.f32 %v271, %v436
      %v438 = vpop.f32.mrf.mxu0
      %v439 = vadd.f32 %v271, %v438
      %440 = vmatmul.bf16.gmra.mxu0 %v340
      %v441 = vpop.f32.mrf.mxu0
      %v442 = vadd.f32 %v271, %v441
      %v443 = vpop.f32.mrf.mxu0
      %v444 = vadd.f32 %v271, %v443
      %445 = vmatmul.bf16.gmra.mxu0 %v341
      %v446 = vpop.f32.mrf.mxu0
      %v447 = vadd.f32 %v271, %v446
      %v448 = vpop.f32.mrf.mxu0
      %v449 = vadd.f32 %v271, %v448
      %450 = vmatmul.bf16.gmra.mxu0 %v342
      %v451 = vpop.f32.mrf.mxu0
      %v452 = vadd.f32 %v271, %v451
      %v453 = vpop.f32.mrf.mxu0
      %v454 = vadd.f32 %v271, %v453
      %455 = vmatmul.bf16.gmra.mxu0 %v343
      %v456 = vpop.f32.mrf.mxu0
      %v457 = vadd.f32 %v271, %v456
      %v458 = vpop.f32.mrf.mxu0
      %v459 = vadd.f32 %v271, %v458
      %460 = vmatmul.bf16.gmra.mxu0 %v344
      %v461 = vpop.f32.mrf.mxu0
      %v462 = vadd.f32 %v271, %v461
      %v463 = vpop.f32.mrf.mxu0
      %v464 = vadd.f32 %v271, %v463
      %465 = vmatmul.bf16.gmra.mxu0 %v345
      %v466 = vpop.f32.mrf.mxu0
      %v467 = vadd.f32 %v271, %v466
      %v468 = vpop.f32.mrf.mxu0
      %v469 = vadd.f32 %v271, %v468
      %470 = vmatmul.bf16.gmra.mxu0 %v346
      %v471 = vpop.f32.mrf.mxu0
      %v472 = vadd.f32 %v271, %v471
      %v473 = vpop.f32.mrf.mxu0
      %v474 = vadd.f32 %v271, %v473
      %475 = vmatmul.bf16.gmra.mxu0 %v347
      %v476 = vpop.f32.mrf.mxu0
      %v477 = vadd.f32 %v271, %v476
      %v478 = vpop.f32.mrf.mxu0
      %v479 = vadd.f32 %v271, %v478
      %480 = vmatmul.bf16.gmra.mxu0 %v348
      %v481 = vpop.f32.mrf.mxu0
      %v482 = vadd.f32 %v271, %v481
      %v483 = vpop.f32.mrf.mxu0
      %v484 = vadd.f32 %v271, %v483
      %485 = vmatmul.bf16.gmra.mxu0 %v349
      %v486 = vpop.f32.mrf.mxu0
      %v487 = vadd.f32 %v271, %v486
      %v488 = vpop.f32.mrf.mxu0
      %v489 = vadd.f32 %v271, %v488
      %490 = vmatmul.bf16.gmra.mxu0 %v350
      %v491 = vpop.f32.mrf.mxu0
      %v492 = vadd.f32 %v271, %v491
      %v493 = vpop.f32.mrf.mxu0
      %v494 = vadd.f32 %v271, %v493
      %495 = vmatmul.bf16.gmra.mxu0 %v351
      %v496 = vpop.f32.mrf.mxu0
      %v497 = vadd.f32 %v271, %v496
      %v498 = vpop.f32.mrf.mxu0
      %v499 = vadd.f32 %v271, %v498
      %500 = vmatmul.bf16.gmra.mxu0 %v352
      %v501 = vpop.f32.mrf.mxu0
      %v502 = vadd.f32 %v271, %v501
      %v503 = vpop.f32.mrf.mxu0
      %v504 = vadd.f32 %v271, %v503
      %505 = vdwg.mxu0
      %v506 = vmax.f32 %v427, 0.0
      %v507 = vmax.f32 %v429, 0.0
      %v508 = vmax.f32 %v432, 0.0
      %v509 = vmax.f32 %v434, 0.0
      %v510 = vmax.f32 %v437, 0.0
      %v511 = vmax.f32 %v439, 0.0
      %v512 = vmax.f32 %v442, 0.0
      %v513 = vmax.f32 %v444, 0.0
      %v514 = vmax.f32 %v447, 0.0
      %v515 = vmax.f32 %v449, 0.0
      %v516 = vmax.f32 %v452, 0.0
      %v517 = vmax.f32 %v454, 0.0
      %v518 = vmax.f32 %v457, 0.0
      %v519 = vmax.f32 %v459, 0.0
      %v520 = vmax.f32 %v462, 0.0
      %v521 = vmax.f32 %v464, 0.0
      %v522 = vmax.f32 %v467, 0.0
      %v523 = vmax.f32 %v469, 0.0
      %v524 = vmax.f32 %v472, 0.0
      %v525 = vmax.f32 %v474, 0.0
      %v526 = vmax.f32 %v477, 0.0
      %v527 = vmax.f32 %v479, 0.0
      %v528 = vmax.f32 %v482, 0.0
      %v529 = vmax.f32 %v484, 0.0
      %v530 = vmax.f32 %v487, 0.0
      %v531 = vmax.f32 %v489, 0.0
      %v532 = vmax.f32 %v492, 0.0
      %v533 = vmax.f32 %v494, 0.0
      %v534 = vmax.f32 %v497, 0.0
      %v535 = vmax.f32 %v499, 0.0
      %v536 = vmax.f32 %v502, 0.0
      %v537 = vmax.f32 %v504, 0.0
      %v538 = vadd.f32 %v506, %v507
      %v539 = vadd.f32 %v538, %v508
      %v540 = vadd.f32 %v539, %v509
      %v541 = vadd.f32 %v540, %v510
      %v542 = vadd.f32 %v541, %v511
      %v543 = vadd.f32 %v542, %v512
      %v544 = vadd.f32 %v543, %v513
      %v545 = vadd.f32 %v544, %v514
      %v546 = vadd.f32 %v545, %v515
      %v547 = vadd.f32 %v546, %v516
      %v548 = vadd.f32 %v547, %v517
      %v549 = vadd.f32 %v548, %v518
      %v550 = vadd.f32 %v549, %v519
      %v551 = vadd.f32 %v550, %v520
      %v552 = vadd.f32 %v551, %v521
      %v553 = vadd.f32 %v552, %v522
      %v554 = vadd.f32 %v553, %v523
      %v555 = vadd.f32 %v554, %v524
      %v556 = vadd.f32 %v555, %v525
      %v557 = vadd.f32 %v556, %v526
      %v558 = vadd.f32 %v557, %v527
      %v559 = vadd.f32 %v558, %v528
      %v560 = vadd.f32 %v559, %v529
      %v561 = vadd.f32 %v560, %v530
      %v562 = vadd.f32 %v561, %v531
      %v563 = vadd.f32 %v562, %v532
      %v564 = vadd.f32 %v563, %v533
      %v565 = vadd.f32 %v564, %v534
      %v566 = vadd.f32 %v565, %v535
      %v567 = vadd.f32 %v566, %v536
      %v568 = vadd.f32 %v567, %v537
      %v569 = vrot.slane %v568, 4
      %v570 = vadd.f32 %v568, %v569
      %v571 = vrot.slane %v570, 2
      %v572 = vadd.f32 %v570, %v571
      %v573 = vrot.slane %v572, 1
      %v574 = vadd.f32 %v572, %v573
      %v575 = vpack.c.bf16 %v574, %v574
      %v576 = vld [vmem:[%s3] sm:$0xf]
      %v577 = vld [vmem:[%s3 + $0x4] sm:$0xf]
      %v578 = vld [vmem:[%s3 + $0x8] sm:$0xf]
      %v579 = vld [vmem:[%s3 + $0xc] sm:$0xf]
      %v580 = vld [vmem:[%s3 + $0x10] sm:$0xf]
      %v581 = vld [vmem:[%s3 + $0x14] sm:$0xf]
      %v582 = vld [vmem:[%s3 + $0x18] sm:$0xf]
      %v583 = vld [vmem:[%s3 + $0x1c] sm:$0xf]
      %v584 = vld [vmem:[%s3 + $0x20] sm:$0xf]
      %v585 = vld [vmem:[%s3 + $0x24] sm:$0xf]
      %v586 = vld [vmem:[%s3 + $0x28] sm:$0xf]
      %v587 = vld [vmem:[%s3 + $0x2c] sm:$0xf]
      %v588 = vld [vmem:[%s3 + $0x30] sm:$0xf]
      %v589 = vld [vmem:[%s3 + $0x34] sm:$0xf]
      %v590 = vld [vmem:[%s3 + $0x38] sm:$0xf]
      %v591 = vld [vmem:[%s3 + $0x3c] sm:$0xf]
      %v592 = vld [vmem:[%s4] sm:$0x1]
      %v609 = vunpack.c.l.b16 %v576
      %v610 = vunpack.c.l.b16 %v577
      %v611 = vunpack.c.l.b16 %v578
      %v612 = vunpack.c.l.b16 %v579
      %v613 = vunpack.c.l.b16 %v580
      %v614 = vunpack.c.l.b16 %v581
      %v615 = vunpack.c.l.b16 %v582
      %v616 = vunpack.c.l.b16 %v583
      %v617 = vunpack.c.l.b16 %v584
      %v618 = vunpack.c.l.b16 %v585
      %v619 = vunpack.c.l.b16 %v586
      %v620 = vunpack.c.l.b16 %v587
      %v621 = vunpack.c.l.b16 %v588
      %v622 = vunpack.c.l.b16 %v589
      %v623 = vunpack.c.l.b16 %v590
      %v624 = vunpack.c.l.b16 %v591
      %v625 = vpack.c.b16 %v610, %v609
      %v626 = vpack.c.b16 %v612, %v611
      %v627 = vpack.c.b16 %v614, %v613
      %v628 = vpack.c.b16 %v616, %v615
      %v629 = vpack.c.b16 %v618, %v617
      %v630 = vpack.c.b16 %v620, %v619
      %v631 = vpack.c.b16 %v622, %v621
      %v632 = vpack.c.b16 %v624, %v623
      %641 = vmatpush.bf16.msra.mxu0 %v632
      %642 = vmatpush.bf16.msra.mxu0 %v631
      %643 = vmatpush.bf16.msra.mxu0 %v630
      %644 = vmatpush.bf16.msra.mxu0 %v629
      %645 = vmatpush.bf16.msra.mxu0 %v628
      %646 = vmatpush.bf16.msra.mxu0 %v627
      %647 = vmatpush.bf16.msra.mxu0 %v626
      %648 = vmatpush.bf16.msra.mxu0 %v625
      %649 = vmatmul.bf16.gmra.mxu0 %v575
      %v650 = vpop.f32.mrf.mxu0
      %v651 = vadd.f32 %v592, %v650
      %v652 = vpop.f32.mrf.mxu0
      %653 = vdwg.mxu0
      %654 = vst [vmem:[%s220] sm:$0x1] %v651
      %p655 = scmp.lt.s32.totalorder %s16, 1
      %s656 = scalar_select %p655, %s16, 1
      %s657 = scalar_lea.vmem %s5, %s656
      // Predicated region
      $region41: #{cmr_forward.1} parent=39 // pred_check
        %p658 = pneg %p144
      $region42: #{cmr_forward.1} parent=39 // pred_check_branch
        %660 = sbr.rel (%p658) target = $region44
      $region43: #{cmr_forward.1} parent=39 // pred_region
        _
      $region44: #{cmr_forward.1} parent=39 // pred_fallthru
        _
    $region40: #{cmr_forward.1} parent=5 // pred_fallthru
      _
    %p661 = scmp.le.s32.totalorder 2, %s11
    // Predicated region
    $region45: #{cmr_forward.1} parent=5 // pred_check
      %p662 = pneg %p661
    $region46: #{cmr_forward.1} parent=5 // pred_check_branch
      %664 = sbr.rel (%p662) target = $region48
    $region47: #{cmr_forward.1} parent=5 // pred_region
      %s665 = ssub.s32 %s11, 2
      // Predicated region
      $region49: #{cmr_forward.1} parent=47 // pred_check
        %p666 = pneg %p150
      $region50: #{cmr_forward.1} parent=47 // pred_check_branch
        %668 = sbr.rel (%p666) target = $region52
      $region51: #{cmr_forward.1} parent=47 // pred_region
        %p669 = scmp.lt.s32.totalorder %s17, 1
        %s670 = scalar_select %p669, %s17, 1
        %s671 = scalar_lea.vmem %s5, %s670
      $region52: #{cmr_forward.1} parent=47 // pred_fallthru
        _
    $region48: #{cmr_forward.1} parent=5 // pred_fallthru
      _
  $region6: #{cmr_forward.1} parent=0 // loop_footer
    %s15 = sadd.s32 1, %s11
  $region7: #{cmr_forward.1} parent=0 // loop_footer_branch
    %10 = sbr.rel target = $region3
  $region8: #{cmr_forward.1} parent=0 // loop_exit
    _

</llo_original>
